<compile_context>
chip_gen: v6e
topology: v6e:2x2x1
jax: 0.10.0
libtpu: 0.0.40
codegen_flags: <defaults>
</compile_context>

<pallas_src>
import functools

import jax
import jax.numpy as jnp
from jax import lax
from jax.experimental import pallas as pl
from jax.experimental.pallas import tpu as pltpu

INPUT = 28
HIDDEN = 64
OUT = 10
MAX_BLOCK_ROWS = 128  # MXU row width; batch rows per grid step (cap)


def _rnn_fused_kernel(x_ref, wih0_ref, b0_ref, wfused_ref, b1_ref,
                      wfc_ref, bfc_ref, out_ref, gx_buf,
                      *, bb, t_steps, mm_dtype):
    """One batch block: fused 2-layer tanh RNN over t_steps timesteps + fc."""
    H = HIDDEN

    # ---- hoisted layer-0 input projection: one big MXU matmul, bias folded ----
    gx_buf[...] = (jnp.dot(x_ref[...], wih0_ref[...],
                           preferred_element_type=jnp.float32)
                   + b0_ref[...])                        # (t_steps*bb, H) f32

    w = wfused_ref[...]      # (2H, 2H) = [[whh0, wih1], [0, whh1]]
    b1 = b1_ref[...]         # (1, H) f32

    # t = 0: both initial hidden states are zero -> no recurrent matmul.
    h0 = jnp.tanh(gx_buf[0:bb, :])                       # h0_0
    h1 = jnp.zeros((bb, H), jnp.float32)                 # h1_{-1} = 0

    # Fused recurrence, layer 1 one step behind layer 0:
    #   carry [h0_{t-1} | h1_{t-2}]  --(one (bb,2H)@(2H,2H) matmul)-->
    #   h0_t   = tanh(gx_t + left half)     (gx_t already contains b0)
    #   h1_{t-1} = tanh(right half + b1)
    for t in range(1, t_steps):                          # fully unrolled (static T)
        s = jnp.concatenate([h0, h1], axis=-1).astype(mm_dtype)
        p = jnp.dot(s, w, preferred_element_type=jnp.float32)
        h0 = jnp.tanh(gx_buf[t * bb:(t + 1) * bb, :] + p[:, :H])
        h1 = jnp.tanh(p[:, H:] + b1)

    # drain step: produce h1_{T-1} from [h0_{T-1} | h1_{T-2}]
    s = jnp.concatenate([h0, h1], axis=-1).astype(mm_dtype)
    p = jnp.dot(s, w[:, H:], preferred_element_type=jnp.float32)
    h1 = jnp.tanh(p + b1)

    # ---- fc on the final timestep's layer-1 hidden state ----
    out_ref[...] = (jnp.dot(h1.astype(mm_dtype), wfc_ref[...],
                            preferred_element_type=jnp.float32)
                    + bfc_ref[...]).astype(out_ref.dtype)


def rnn_net_forward(x_btI, params, *, matmul_dtype=jnp.float32,
                    block_rows=MAX_BLOCK_ROWS):
    """x_btI: (B, T, 28) float32, like the PyTorch batch_first input."""
    B, T, I = x_btI.shape
    assert I == INPUT
    (wih0, whh0, b0, wih1, whh1, b1, wfc, bfc) = params
    H = HIDDEN

    # Batch padding / block sizing: whole batch in one block when small,
    # otherwise 128-row (MXU-width) blocks over a "parallel" grid.
    bp8 = ((B + 7) // 8) * 8
    bb = min(block_rows, bp8)
    bp = ((bp8 + bb - 1) // bb) * bb
    nb = bp // bb

    # Layout shuffle OUTSIDE the kernel: per block, time-major rows:
    # (bp, T, I) -> (nb, bb, T, I) -> (nb, T, bb, I) -> flat (nb*T*bb, I).
    x_p = jnp.pad(x_btI, ((0, bp - B), (0, 0), (0, 0)))
    x_flat = (x_p.reshape(nb, bb, T, I)
                 .transpose(0, 2, 1, 3)
                 .reshape(nb * T * bb, I)
                 .astype(matmul_dtype))

    # Fused recurrent weight: [[whh0, wih1], [0, whh1]]  (2H, 2H), built once.
    w_fused = jnp.concatenate(
        [jnp.concatenate([whh0, wih1], axis=1),
         jnp.concatenate([jnp.zeros((H, H), jnp.float32), whh1], axis=1)],
        axis=0).astype(matmul_dtype)

    kernel = functools.partial(_rnn_fused_kernel, bb=bb, t_steps=T,
                               mm_dtype=matmul_dtype)

    out = pl.pallas_call(
        kernel,
        out_shape=jax.ShapeDtypeStruct((bp, OUT), jnp.float32),
        grid_spec=pltpu.PrefetchScalarGridSpec(
            num_scalar_prefetch=0,
            grid=(nb,),
            in_specs=[
                pl.BlockSpec((T * bb, INPUT), lambda b: (b, 0)),   # x block
                pl.BlockSpec((INPUT, H), lambda b: (0, 0)),        # wih0
                pl.BlockSpec((1, H), lambda b: (0, 0)),            # b0 (ih+hh)
                pl.BlockSpec((2 * H, 2 * H), lambda b: (0, 0)),    # fused W
                pl.BlockSpec((1, H), lambda b: (0, 0)),            # b1 (ih+hh)
                pl.BlockSpec((H, OUT), lambda b: (0, 0)),          # wfc
                pl.BlockSpec((1, OUT), lambda b: (0, 0)),          # bfc
            ],
            out_specs=pl.BlockSpec((bb, OUT), lambda b: (b, 0)),
            scratch_shapes=[pltpu.VMEM((T * bb, HIDDEN), jnp.float32)],
        ),
        compiler_params=pltpu.CompilerParams(
            dimension_semantics=("parallel",)),   # v7x: blocks across both TCs
    )(x_flat,
      wih0.astype(matmul_dtype), b0,
      w_fused, b1,
      wfc.astype(matmul_dtype), bfc)

    return out[:B]


def make_params(key):
    """Deterministic synthetic parameters (shapes match nn.RNN / nn.Linear)."""
    ks = jax.random.split(key, 8)
    s = 1.0 / jnp.sqrt(HIDDEN).astype(jnp.float32)

    def u(k, shape):
        return jax.random.uniform(k, shape, jnp.float32, -s, s)

    # PyTorch stores weight_ih_l0 as (H, in); we keep the transposed (in, H).
    # NOTE: when porting real PyTorch weights, b0 = bias_ih_l0 + bias_hh_l0
    # (and b1 = bias_ih_l1 + bias_hh_l1) — the biases are combined here.
    wih0 = u(ks[0], (INPUT, HIDDEN))
    whh0 = u(ks[1], (HIDDEN, HIDDEN))
    b0 = u(ks[2], (1, HIDDEN))
    wih1 = u(ks[3], (HIDDEN, HIDDEN))
    whh1 = u(ks[4], (HIDDEN, HIDDEN))
    b1 = u(ks[5], (1, HIDDEN))
    wfc = u(ks[6], (HIDDEN, OUT))
    bfc = u(ks[7], (1, OUT))
    return (wih0, whh0, b0, wih1, whh1, b1, wfc, bfc)


def reference_forward(x_btI, params):
    """Pure-JAX reference with identical semantics (2-layer tanh RNN + fc)."""
    (wih0, whh0, b0, wih1, whh1, b1, wfc, bfc) = params
    B, T, _ = x_btI.shape
    H = HIDDEN

    def step(carry, x_t):
        h0, h1 = carry
        h0 = jnp.tanh(x_t @ wih0 + h0 @ whh0 + b0)
        h1 = jnp.tanh(h0 @ wih1 + h1 @ whh1 + b1)
        return (h0, h1), None

    z = jnp.zeros((B, H), jnp.float32)
    (h0, h1), _ = lax.scan(step, (z, z), jnp.transpose(x_btI, (1, 0, 2)))
    return h1 @ wfc + bfc


if __name__ == "__main__":
    key = jax.random.PRNGKey(0)
    k_x, k_p = jax.random.split(key)

    B, T = 2, 8
    x = jax.random.normal(k_x, (B, T, INPUT), jnp.float32)
    params = make_params(k_p)

    ref = jax.block_until_ready(reference_forward(x, params))

    # f32 path (v5e-preferred; also the strict-validation path).
    out_f32 = jax.block_until_ready(rnn_net_forward(x, params))
    assert out_f32.shape == (B, OUT)
    assert jnp.allclose(out_f32, ref, atol=1e-5, rtol=1e-5), (out_f32, ref)

    # bf16-matmul path (v6e / v7x MXU-native; f32 accumulation, f32 tanh/bias).
    out_bf16 = jax.block_until_ready(
        rnn_net_forward(x, params, matmul_dtype=jnp.bfloat16))
    assert out_bf16.shape == (B, OUT)
    assert jnp.allclose(out_bf16, ref, atol=7.5e-2, rtol=5e-2), (out_bf16, ref)

    print("KERNEL_OK")
</pallas_src>

<mosaic_0001>
module attributes {stable_mosaic.version = 11 : i64} {
  func.func @_rnn_fused_kernel(%arg0: i32, %arg1: memref<64x28xf32, #tpu.memory_space<vmem>>, %arg2: memref<28x64xf32, #tpu.memory_space<vmem>>, %arg3: memref<1x64xf32, #tpu.memory_space<vmem>>, %arg4: memref<128x128xf32, #tpu.memory_space<vmem>>, %arg5: memref<1x64xf32, #tpu.memory_space<vmem>>, %arg6: memref<64x10xf32, #tpu.memory_space<vmem>>, %arg7: memref<1x10xf32, #tpu.memory_space<vmem>>, %arg8: memref<8x10xf32, #tpu.memory_space<vmem>>, %arg9: memref<64x64xf32, #tpu.memory_space<vmem>>) attributes {dimension_semantics = [#tpu.dimension_semantics<parallel>], iteration_bounds = array<i64: 1>, scalar_prefetch = 0 : i64, scratch_operands = 1 : i64, tpu.core_type = #tpu.core_type<tc>, window_params = [{transform_indices = @transform_0, window_bounds = array<i64: 64, 28>}, {pipeline_mode = #tpu.pipeline_mode<synchronous>, transform_indices = @transform_1, window_bounds = array<i64: 28, 64>}, {pipeline_mode = #tpu.pipeline_mode<synchronous>, transform_indices = @transform_2, window_bounds = array<i64: 1, 64>}, {pipeline_mode = #tpu.pipeline_mode<synchronous>, transform_indices = @transform_3, window_bounds = array<i64: 128, 128>}, {pipeline_mode = #tpu.pipeline_mode<synchronous>, transform_indices = @transform_4, window_bounds = array<i64: 1, 64>}, {pipeline_mode = #tpu.pipeline_mode<synchronous>, transform_indices = @transform_5, window_bounds = array<i64: 64, 10>}, {pipeline_mode = #tpu.pipeline_mode<synchronous>, transform_indices = @transform_6, window_bounds = array<i64: 1, 10>}, {transform_indices = @transform_7, window_bounds = array<i64: 8, 10>}]} {
    %c0 = arith.constant 0 : index
    %c0_0 = arith.constant 0 : index
    %0 = vector.load %arg1[%c0, %c0_0] : memref<64x28xf32, #tpu.memory_space<vmem>>, vector<64x28xf32>
    %c0_1 = arith.constant 0 : index
    %c0_2 = arith.constant 0 : index
    %1 = vector.load %arg2[%c0_1, %c0_2] : memref<28x64xf32, #tpu.memory_space<vmem>>, vector<28x64xf32>
    %cst = arith.constant dense<0.000000e+00> : vector<64x64xf32>
    %2 = tpu.matmul %0, %1, %cst {dimension_numbers = #tpu.dot_dimension_numbers<[1], [0], [0], [1], [0, 0, 1, 1], [], []>} : vector<64x28xf32>, vector<28x64xf32>, vector<64x64xf32> -> vector<64x64xf32>
    %c0_3 = arith.constant 0 : index
    %c0_4 = arith.constant 0 : index
    %3 = vector.load %arg3[%c0_3, %c0_4] : memref<1x64xf32, #tpu.memory_space<vmem>>, vector<1x64xf32>
    %4 = vector.broadcast %3 : vector<1x64xf32> to vector<64x64xf32>
    %5 = arith.addf %2, %4 : vector<64x64xf32>
    %c0_5 = arith.constant 0 : index
    %c0_6 = arith.constant 0 : index
    %6 = vector.load %arg9[%c0_5, %c0_6] : memref<64x64xf32, #tpu.memory_space<vmem>>, vector<64x64xf32>
    tpu.vector_store %arg9[%c0_5, %c0_6], %5 {strides = array<i32>} : memref<64x64xf32, #tpu.memory_space<vmem>>, vector<64x64xf32>,
    %c0_7 = arith.constant 0 : index
    %c0_8 = arith.constant 0 : index
    %7 = vector.load %arg4[%c0_7, %c0_8] : memref<128x128xf32, #tpu.memory_space<vmem>>, vector<128x128xf32>
    %c0_9 = arith.constant 0 : index
    %c0_10 = arith.constant 0 : index
    %8 = vector.load %arg5[%c0_9, %c0_10] : memref<1x64xf32, #tpu.memory_space<vmem>>, vector<1x64xf32>
    %c0_11 = arith.constant 0 : index
    %c0_12 = arith.constant 0 : index
    %9 = vector.load %arg9[%c0_11, %c0_12] : memref<64x64xf32, #tpu.memory_space<vmem>>, vector<8x64xf32>
    %10 = math.tanh %9 : vector<8x64xf32>
    %cst_13 = arith.constant 0.000000e+00 : f32
    %11 = vector.broadcast %cst_13 : f32 to vector<8x64xf32>
    %12 = tpu.concatenate %10, %11 in 1 : vector<8x64xf32>, vector<8x64xf32> -> vector<8x128xf32>
    %cst_14 = arith.constant dense<0.000000e+00> : vector<8x128xf32>
    %13 = tpu.matmul %12, %7, %cst_14 {dimension_numbers = #tpu.dot_dimension_numbers<[1], [0], [0], [1], [0, 0, 1, 1], [], []>} : vector<8x128xf32>, vector<128x128xf32>, vector<8x128xf32> -> vector<8x128xf32>
    %c8 = arith.constant 8 : index
    %c0_15 = arith.constant 0 : index
    %14 = vector.load %arg9[%c8, %c0_15] : memref<64x64xf32, #tpu.memory_space<vmem>>, vector<8x64xf32>
    %15 = vector.extract_strided_slice %13 {offsets = [0, 0], sizes = [8, 64], strides = [1, 1]} : vector<8x128xf32> to vector<8x64xf32>
    %16 = arith.addf %14, %15 : vector<8x64xf32>
    %17 = math.tanh %16 : vector<8x64xf32>
    %18 = vector.extract_strided_slice %13 {offsets = [0, 64], sizes = [8, 64], strides = [1, 1]} : vector<8x128xf32> to vector<8x64xf32>
    %19 = vector.broadcast %8 : vector<1x64xf32> to vector<8x64xf32>
    %20 = arith.addf %18, %19 : vector<8x64xf32>
    %21 = math.tanh %20 : vector<8x64xf32>
    %22 = tpu.concatenate %17, %21 in 1 : vector<8x64xf32>, vector<8x64xf32> -> vector<8x128xf32>
    %cst_16 = arith.constant dense<0.000000e+00> : vector<8x128xf32>
    %23 = tpu.matmul %22, %7, %cst_16 {dimension_numbers = #tpu.dot_dimension_numbers<[1], [0], [0], [1], [0, 0, 1, 1], [], []>} : vector<8x128xf32>, vector<128x128xf32>, vector<8x128xf32> -> vector<8x128xf32>
    %c16 = arith.constant 16 : index
    %c0_17 = arith.constant 0 : index
    %24 = vector.load %arg9[%c16, %c0_17] : memref<64x64xf32, #tpu.memory_space<vmem>>, vector<8x64xf32>
    %25 = vector.extract_strided_slice %23 {offsets = [0, 0], sizes = [8, 64], strides = [1, 1]} : vector<8x128xf32> to vector<8x64xf32>
    %26 = arith.addf %24, %25 : vector<8x64xf32>
    %27 = math.tanh %26 : vector<8x64xf32>
    %28 = vector.extract_strided_slice %23 {offsets = [0, 64], sizes = [8, 64], strides = [1, 1]} : vector<8x128xf32> to vector<8x64xf32>
    %29 = vector.broadcast %8 : vector<1x64xf32> to vector<8x64xf32>
    %30 = arith.addf %28, %29 : vector<8x64xf32>
    %31 = math.tanh %30 : vector<8x64xf32>
    %32 = tpu.concatenate %27, %31 in 1 : vector<8x64xf32>, vector<8x64xf32> -> vector<8x128xf32>
    %cst_18 = arith.constant dense<0.000000e+00> : vector<8x128xf32>
    %33 = tpu.matmul %32, %7, %cst_18 {dimension_numbers = #tpu.dot_dimension_numbers<[1], [0], [0], [1], [0, 0, 1, 1], [], []>} : vector<8x128xf32>, vector<128x128xf32>, vector<8x128xf32> -> vector<8x128xf32>
    %c24 = arith.constant 24 : index
    %c0_19 = arith.constant 0 : index
    %34 = vector.load %arg9[%c24, %c0_19] : memref<64x64xf32, #tpu.memory_space<vmem>>, vector<8x64xf32>
    %35 = vector.extract_strided_slice %33 {offsets = [0, 0], sizes = [8, 64], strides = [1, 1]} : vector<8x128xf32> to vector<8x64xf32>
    %36 = arith.addf %34, %35 : vector<8x64xf32>
    %37 = math.tanh %36 : vector<8x64xf32>
    %38 = vector.extract_strided_slice %33 {offsets = [0, 64], sizes = [8, 64], strides = [1, 1]} : vector<8x128xf32> to vector<8x64xf32>
    %39 = vector.broadcast %8 : vector<1x64xf32> to vector<8x64xf32>
    %40 = arith.addf %38, %39 : vector<8x64xf32>
    %41 = math.tanh %40 : vector<8x64xf32>
    %42 = tpu.concatenate %37, %41 in 1 : vector<8x64xf32>, vector<8x64xf32> -> vector<8x128xf32>
    %cst_20 = arith.constant dense<0.000000e+00> : vector<8x128xf32>
    %43 = tpu.matmul %42, %7, %cst_20 {dimension_numbers = #tpu.dot_dimension_numbers<[1], [0], [0], [1], [0, 0, 1, 1], [], []>} : vector<8x128xf32>, vector<128x128xf32>, vector<8x128xf32> -> vector<8x128xf32>
    %c32 = arith.constant 32 : index
    %c0_21 = arith.constant 0 : index
    %44 = vector.load %arg9[%c32, %c0_21] : memref<64x64xf32, #tpu.memory_space<vmem>>, vector<8x64xf32>
    %45 = vector.extract_strided_slice %43 {offsets = [0, 0], sizes = [8, 64], strides = [1, 1]} : vector<8x128xf32> to vector<8x64xf32>
    %46 = arith.addf %44, %45 : vector<8x64xf32>
    %47 = math.tanh %46 : vector<8x64xf32>
    %48 = vector.extract_strided_slice %43 {offsets = [0, 64], sizes = [8, 64], strides = [1, 1]} : vector<8x128xf32> to vector<8x64xf32>
    %49 = vector.broadcast %8 : vector<1x64xf32> to vector<8x64xf32>
    %50 = arith.addf %48, %49 : vector<8x64xf32>
    %51 = math.tanh %50 : vector<8x64xf32>
    %52 = tpu.concatenate %47, %51 in 1 : vector<8x64xf32>, vector<8x64xf32> -> vector<8x128xf32>
    %cst_22 = arith.constant dense<0.000000e+00> : vector<8x128xf32>
    %53 = tpu.matmul %52, %7, %cst_22 {dimension_numbers = #tpu.dot_dimension_numbers<[1], [0], [0], [1], [0, 0, 1, 1], [], []>} : vector<8x128xf32>, vector<128x128xf32>, vector<8x128xf32> -> vector<8x128xf32>
    %c40 = arith.constant 40 : index
    %c0_23 = arith.constant 0 : index
    %54 = vector.load %arg9[%c40, %c0_23] : memref<64x64xf32, #tpu.memory_space<vmem>>, vector<8x64xf32>
    %55 = vector.extract_strided_slice %53 {offsets = [0, 0], sizes = [8, 64], strides = [1, 1]} : vector<8x128xf32> to vector<8x64xf32>
    %56 = arith.addf %54, %55 : vector<8x64xf32>
    %57 = math.tanh %56 : vector<8x64xf32>
    %58 = vector.extract_strided_slice %53 {offsets = [0, 64], sizes = [8, 64], strides = [1, 1]} : vector<8x128xf32> to vector<8x64xf32>
    %59 = vector.broadcast %8 : vector<1x64xf32> to vector<8x64xf32>
    %60 = arith.addf %58, %59 : vector<8x64xf32>
    %61 = math.tanh %60 : vector<8x64xf32>
    %62 = tpu.concatenate %57, %61 in 1 : vector<8x64xf32>, vector<8x64xf32> -> vector<8x128xf32>
    %cst_24 = arith.constant dense<0.000000e+00> : vector<8x128xf32>
    %63 = tpu.matmul %62, %7, %cst_24 {dimension_numbers = #tpu.dot_dimension_numbers<[1], [0], [0], [1], [0, 0, 1, 1], [], []>} : vector<8x128xf32>, vector<128x128xf32>, vector<8x128xf32> -> vector<8x128xf32>
    %c48 = arith.constant 48 : index
    %c0_25 = arith.constant 0 : index
    %64 = vector.load %arg9[%c48, %c0_25] : memref<64x64xf32, #tpu.memory_space<vmem>>, vector<8x64xf32>
    %65 = vector.extract_strided_slice %63 {offsets = [0, 0], sizes = [8, 64], strides = [1, 1]} : vector<8x128xf32> to vector<8x64xf32>
    %66 = arith.addf %64, %65 : vector<8x64xf32>
    %67 = math.tanh %66 : vector<8x64xf32>
    %68 = vector.extract_strided_slice %63 {offsets = [0, 64], sizes = [8, 64], strides = [1, 1]} : vector<8x128xf32> to vector<8x64xf32>
    %69 = vector.broadcast %8 : vector<1x64xf32> to vector<8x64xf32>
    %70 = arith.addf %68, %69 : vector<8x64xf32>
    %71 = math.tanh %70 : vector<8x64xf32>
    %72 = tpu.concatenate %67, %71 in 1 : vector<8x64xf32>, vector<8x64xf32> -> vector<8x128xf32>
    %cst_26 = arith.constant dense<0.000000e+00> : vector<8x128xf32>
    %73 = tpu.matmul %72, %7, %cst_26 {dimension_numbers = #tpu.dot_dimension_numbers<[1], [0], [0], [1], [0, 0, 1, 1], [], []>} : vector<8x128xf32>, vector<128x128xf32>, vector<8x128xf32> -> vector<8x128xf32>
    %c56 = arith.constant 56 : index
    %c0_27 = arith.constant 0 : index
    %74 = vector.load %arg9[%c56, %c0_27] : memref<64x64xf32, #tpu.memory_space<vmem>>, vector<8x64xf32>
    %75 = vector.extract_strided_slice %73 {offsets = [0, 0], sizes = [8, 64], strides = [1, 1]} : vector<8x128xf32> to vector<8x64xf32>
    %76 = arith.addf %74, %75 : vector<8x64xf32>
    %77 = math.tanh %76 : vector<8x64xf32>
    %78 = vector.extract_strided_slice %73 {offsets = [0, 64], sizes = [8, 64], strides = [1, 1]} : vector<8x128xf32> to vector<8x64xf32>
    %79 = vector.broadcast %8 : vector<1x64xf32> to vector<8x64xf32>
    %80 = arith.addf %78, %79 : vector<8x64xf32>
    %81 = math.tanh %80 : vector<8x64xf32>
    %82 = tpu.concatenate %77, %81 in 1 : vector<8x64xf32>, vector<8x64xf32> -> vector<8x128xf32>
    %83 = vector.extract_strided_slice %7 {offsets = [0, 64], sizes = [128, 64], strides = [1, 1]} : vector<128x128xf32> to vector<128x64xf32>
    %cst_28 = arith.constant dense<0.000000e+00> : vector<8x64xf32>
    %84 = tpu.matmul %82, %83, %cst_28 {dimension_numbers = #tpu.dot_dimension_numbers<[1], [0], [0], [1], [0, 0, 1, 1], [], []>} : vector<8x128xf32>, vector<128x64xf32>, vector<8x64xf32> -> vector<8x64xf32>
    %85 = vector.broadcast %8 : vector<1x64xf32> to vector<8x64xf32>
    %86 = arith.addf %84, %85 : vector<8x64xf32>
    %87 = math.tanh %86 : vector<8x64xf32>
    %c0_29 = arith.constant 0 : index
    %c0_30 = arith.constant 0 : index
    %88 = vector.load %arg6[%c0_29, %c0_30] : memref<64x10xf32, #tpu.memory_space<vmem>>, vector<64x10xf32>
    %cst_31 = arith.constant dense<0.000000e+00> : vector<8x10xf32>
    %89 = tpu.matmul %87, %88, %cst_31 {dimension_numbers = #tpu.dot_dimension_numbers<[1], [0], [0], [1], [0, 0, 1, 1], [], []>} : vector<8x64xf32>, vector<64x10xf32>, vector<8x10xf32> -> vector<8x10xf32>
    %c0_32 = arith.constant 0 : index
    %c0_33 = arith.constant 0 : index
    %90 = vector.load %arg7[%c0_32, %c0_33] : memref<1x10xf32, #tpu.memory_space<vmem>>, vector<1x10xf32>
    %91 = vector.broadcast %90 : vector<1x10xf32> to vector<8x10xf32>
    %92 = arith.addf %89, %91 : vector<8x10xf32>
    %c0_34 = arith.constant 0 : index
    %c0_35 = arith.constant 0 : index
    %93 = vector.load %arg8[%c0_34, %c0_35] : memref<8x10xf32, #tpu.memory_space<vmem>>, vector<8x10xf32>
    tpu.vector_store %arg8[%c0_34, %c0_35], %92 {strides = array<i32>} : memref<8x10xf32, #tpu.memory_space<vmem>>, vector<8x10xf32>,
    return
  }
  func.func @transform_0(%arg0: i32) -> (i32, i32) {
    %c0_i32 = arith.constant 0 : i32
    %c0_i32_0 = arith.constant 0 : i32
    return %arg0, %c0_i32 : i32, i32
  }
  func.func @transform_1(%arg0: i32) -> (i32, i32) {
    %c0_i32 = arith.constant 0 : i32
    %c0_i32_0 = arith.constant 0 : i32
    %c0_i32_1 = arith.constant 0 : i32
    return %c0_i32, %c0_i32_0 : i32, i32
  }
  func.func @transform_2(%arg0: i32) -> (i32, i32) {
    %c0_i32 = arith.constant 0 : i32
    %c0_i32_0 = arith.constant 0 : i32
    %c0_i32_1 = arith.constant 0 : i32
    return %c0_i32, %c0_i32_0 : i32, i32
  }
  func.func @transform_3(%arg0: i32) -> (i32, i32) {
    %c0_i32 = arith.constant 0 : i32
    %c0_i32_0 = arith.constant 0 : i32
    %c0_i32_1 = arith.constant 0 : i32
    return %c0_i32, %c0_i32_0 : i32, i32
  }
  func.func @transform_4(%arg0: i32) -> (i32, i32) {
    %c0_i32 = arith.constant 0 : i32
    %c0_i32_0 = arith.constant 0 : i32
    %c0_i32_1 = arith.constant 0 : i32
    return %c0_i32, %c0_i32_0 : i32, i32
  }
  func.func @transform_5(%arg0: i32) -> (i32, i32) {
    %c0_i32 = arith.constant 0 : i32
    %c0_i32_0 = arith.constant 0 : i32
    %c0_i32_1 = arith.constant 0 : i32
    return %c0_i32, %c0_i32_0 : i32, i32
  }
  func.func @transform_6(%arg0: i32) -> (i32, i32) {
    %c0_i32 = arith.constant 0 : i32
    %c0_i32_0 = arith.constant 0 : i32
    %c0_i32_1 = arith.constant 0 : i32
    return %c0_i32, %c0_i32_0 : i32, i32
  }
  func.func @transform_7(%arg0: i32) -> (i32, i32) {
    %c0_i32 = arith.constant 0 : i32
    %c0_i32_0 = arith.constant 0 : i32
    return %arg0, %c0_i32 : i32, i32
  }
}

</mosaic_0001>

<llo_original>
// kernel: tpu_custom_call.1
$region0: #{tpu_custom_call.1}
  #allocation0 [shape = 'u32[]', space=smem, size = 0x4, offset = 0x4, fixed_abs, tag = 'smem constant byte address 0x4 - core index']
  #allocation1 [shape = 'u32[144,128]{1,0:T(1,128)}', space=vmem, size = 0x12000, scoped, tag = 'internal scratch']
  #allocation2 [shape = 'f32[64,64]{1,0:T(8,128)}', space=vmem, size = 0x8000, scoped, tag = 'scratch operand']
  %s0 = inlined_call_operand.vmem [shape: f32[64,28], index: 0, kind: input, shape index: {}]
  %s1 = inlined_call_operand.vmem [shape: f32[28,64], index: 1, kind: input, shape index: {}]
  %s2 = inlined_call_operand.vmem [shape: f32[1,64], index: 2, kind: input, shape index: {}]
  %s3 = inlined_call_operand.vmem [shape: f32[128,128], index: 3, kind: input, shape index: {}]
  %s4 = inlined_call_operand.vmem [shape: f32[1,64], index: 4, kind: input, shape index: {}]
  %s5 = inlined_call_operand.vmem [shape: f32[64,10], index: 5, kind: input, shape index: {}]
  %s6 = inlined_call_operand.vmem [shape: f32[1,10], index: 6, kind: input, shape index: {}]
  %s7 = inlined_call_operand.hbm [shape: f32[8,10], index: 7, kind: output, shape index: {}]
  %s8 = sld [smem:[#allocation0]]
  $region38: #{tpu_custom_call.1} parent=0
    _
  %s10 = ssub.s32 1, %s8
  %s11 = scalar_select 0, %s10, %s8
  $region1: #{tpu_custom_call.1} parent=0
    #allocation3 [shape = 'u8[4096]{0}', space=vmem, size = 0x1000, scoped, tag = 'output window, operand 0, single buffered']
    #allocation4 [shape = 's32[1]{0}', space=sflag, size = 0x4, scoped, tag = 'scoped memory for tpu_custom_call.1']
    %12 = vsyncpa [#allocation4], 0
    // Predicated region
    $region2: #{tpu_custom_call.1} parent=1 // pred_check
      _
    $region3: #{tpu_custom_call.1} parent=1 // pred_check_branch
      %14 = sbr.rel (0) target = $region5
    $region4: #{tpu_custom_call.1} parent=1 // pred_region
      _
    $region5: #{tpu_custom_call.1} parent=1 // pred_fallthru
      _
    // Predicated region
    $region6: #{tpu_custom_call.1} parent=1 // pred_check
      _
    $region7: #{tpu_custom_call.1} parent=1 // pred_check_branch
      %16 = sbr.rel (0) target = $region9
    $region8: #{tpu_custom_call.1} parent=1 // pred_region
      _
    $region9: #{tpu_custom_call.1} parent=1 // pred_fallthru
      _
    // Predicated region
    $region10: #{tpu_custom_call.1} parent=1 // pred_check
      _
    $region11: #{tpu_custom_call.1} parent=1 // pred_check_branch
      %18 = sbr.rel (0) target = $region13
    $region12: #{tpu_custom_call.1} parent=1 // pred_region
      _
    $region13: #{tpu_custom_call.1} parent=1 // pred_fallthru
      _
    // Predicated region
    $region14: #{tpu_custom_call.1} parent=1 // pred_check
      _
    $region15: #{tpu_custom_call.1} parent=1 // pred_check_branch
      %20 = sbr.rel (0) target = $region17
    $region16: #{tpu_custom_call.1} parent=1 // pred_region
      _
    $region17: #{tpu_custom_call.1} parent=1 // pred_fallthru
      _
    // Predicated region
    $region18: #{tpu_custom_call.1} parent=1 // pred_check
      _
    $region19: #{tpu_custom_call.1} parent=1 // pred_check_branch
      %22 = sbr.rel (0) target = $region21
    $region20: #{tpu_custom_call.1} parent=1 // pred_region
      _
    $region21: #{tpu_custom_call.1} parent=1 // pred_fallthru
      _
    // Predicated region
    $region22: #{tpu_custom_call.1} parent=1 // pred_check
      _
    $region23: #{tpu_custom_call.1} parent=1 // pred_check_branch
      %24 = sbr.rel (0) target = $region25
    $region24: #{tpu_custom_call.1} parent=1 // pred_region
      _
    $region25: #{tpu_custom_call.1} parent=1 // pred_fallthru
      _
    // Predicated region
    $region26: #{tpu_custom_call.1} parent=1 // pred_check
      _
    $region27: #{tpu_custom_call.1} parent=1 // pred_check_branch
      %26 = sbr.rel (0) target = $region29
    $region28: #{tpu_custom_call.1} parent=1 // pred_region
      _
    $region29: #{tpu_custom_call.1} parent=1 // pred_fallthru
      _
    %v27 = vld [vmem:[%s0] sm:$0xff]
    %v28 = vld [vmem:[%s0 + $0x8] sm:$0xff]
    %v29 = vld [vmem:[%s0 + $0x10] sm:$0xff]
    %v30 = vld [vmem:[%s0 + $0x18] sm:$0xff]
    %v31 = vld [vmem:[%s0 + $0x20] sm:$0xff]
    %v32 = vld [vmem:[%s0 + $0x28] sm:$0xff]
    %v33 = vld [vmem:[%s0 + $0x30] sm:$0xff]
    %v34 = vld [vmem:[%s0 + $0x38] sm:$0xff]
    %v35 = vld [vmem:[%s1] sm:$0xff]
    %v36 = vld [vmem:[%s1 + $0x8] sm:$0xff]
    %v37 = vld [vmem:[%s1 + $0x10] sm:$0xff]
    %v38 = vld [vmem:[%s1 + $0x18] sm:$0xf]
    %v39 = vld [vmem:[%s2] sm:$0x1]
    %v41 = vlaneseq
    %v42 = vshrl.u32 %v41, 7
    %v43 = vsub.s32 0, %v42
    %v44 = vrot.slane %v39, %v43
    %vm46 = vcmask 228352
    %v48 = vsel %vm46, %v27, 0
    %v51 = vsel %vm46, %v28, 0
    %v54 = vsel %vm46, %v29, 0
    %v57 = vsel %vm46, %v30, 0
    %v60 = vsel %vm46, %v31, 0
    %v63 = vsel %vm46, %v32, 0
    %v66 = vsel %vm46, %v33, 0
    %v69 = vsel %vm46, %v34, 0
    %vm71 = vcmask 1043456
    %v73 = vsel %vm71, %v38, 0
    %75 = vmatprep.subr.mxu0 0.0
    %76 = vmatpush1.msra.mxu0 0.0
    %77 = vmatprep.subr.mxu0 0.0
    %78 = vmatpush1.msra.mxu0 0.0
    %79 = vmatprep.subr.mxu0 0.0
    %80 = vmatpush1.msra.mxu0 0.0
    %81 = vmatprep.subr.mxu0 0.0
    %82 = vmatpush1.msra.mxu0 0.0
    %83 = vmatprep.subr.mxu0 0.0
    %84 = vmatpush1.msra.mxu0 0.0
    %85 = vmatprep.subr.mxu0 0.0
    %86 = vmatpush1.msra.mxu0 0.0
    %87 = vmatprep.subr.mxu0 0.0
    %88 = vmatpush1.msra.mxu0 0.0
    %89 = vmatprep.subr.mxu0 0.0
    %90 = vmatpush1.msra.mxu0 0.0
    %91 = vmatprep.subr.mxu0 0.0
    %92 = vmatpush1.msra.mxu0 0.0
    %93 = vmatprep.subr.mxu0 0.0
    %94 = vmatpush1.msra.mxu0 0.0
    %95 = vmatprep.subr.mxu0 0.0
    %96 = vmatpush1.msra.mxu0 0.0
    %97 = vmatprep.subr.mxu0 0.0
    %98 = vmatpush1.msra.mxu0 0.0
    %99 = vmatprep.subr.mxu0 0.0
    %100 = vmatpush1.msra.mxu0 %v73
    %101 = vmatprep.subr.mxu0 0.0
    %102 = vmatpush1.msra.mxu0 %v37
    %103 = vmatprep.subr.mxu0 0.0
    %104 = vmatpush1.msra.mxu0 %v36
    %105 = vmatprep.subr.mxu0 0.0
    %106 = vmatpush1.msra.mxu0 %v35
    %107 = vmatprep.subr.mxu0 0.0
    %108 = vmatpush2.msra.mxu0 0.0
    %109 = vmatprep.subr.mxu0 0.0
    %110 = vmatpush2.msra.mxu0 0.0
    %111 = vmatprep.subr.mxu0 0.0
    %112 = vmatpush2.msra.mxu0 0.0
    %113 = vmatprep.subr.mxu0 0.0
    %114 = vmatpush2.msra.mxu0 0.0
    %115 = vmatprep.subr.mxu0 0.0
    %116 = vmatpush2.msra.mxu0 0.0
    %117 = vmatprep.subr.mxu0 0.0
    %118 = vmatpush2.msra.mxu0 0.0
    %119 = vmatprep.subr.mxu0 0.0
    %120 = vmatpush2.msra.mxu0 0.0
    %121 = vmatprep.subr.mxu0 0.0
    %122 = vmatpush2.msra.mxu0 0.0
    %123 = vmatprep.subr.mxu0 0.0
    %124 = vmatpush2.msra.mxu0 0.0
    %125 = vmatprep.subr.mxu0 0.0
    %126 = vmatpush2.msra.mxu0 0.0
    %127 = vmatprep.subr.mxu0 0.0
    %128 = vmatpush2.msra.mxu0 0.0
    %129 = vmatprep.subr.mxu0 0.0
    %130 = vmatpush2.msra.mxu0 0.0
    %131 = vmatprep.subr.mxu0 0.0
    %132 = vmatpush2.msra.mxu0 0.0
    %133 = vmatprep.subr.mxu0 0.0
    %134 = vmatpush2.msra.mxu0 0.0
    %135 = vmatprep.subr.mxu0 0.0
    %136 = vmatpush2.msra.mxu0 0.0
    %137 = vmatprep.subr.mxu0 0.0
    %138 = vmatpush2.msra.mxu0 0.0
    %139 = vmatprep.mubr.f32.mxu0 0.0
    %140 = vmatmul.mubr.f32.gmra.mxu0 %v48
    %v141 = vpop.f32.mrf.mxu0
    %v142 = vadd.f32 %v44, %v141
    %v143 = vpop.f32.mrf.mxu0
    %144 = vmatprep.mubr.f32.mxu0 0.0
    %145 = vmatmul.mubr.f32.gmra.mxu0 %v51
    %v146 = vpop.f32.mrf.mxu0
    %v147 = vadd.f32 %v44, %v146
    %v148 = vpop.f32.mrf.mxu0
    %149 = vmatprep.mubr.f32.mxu0 0.0
    %150 = vmatmul.mubr.f32.gmra.mxu0 %v54
    %v151 = vpop.f32.mrf.mxu0
    %v152 = vadd.f32 %v44, %v151
    %v153 = vpop.f32.mrf.mxu0
    %154 = vmatprep.mubr.f32.mxu0 0.0
    %155 = vmatmul.mubr.f32.gmra.mxu0 %v57
    %v156 = vpop.f32.mrf.mxu0
    %v157 = vadd.f32 %v44, %v156
    %v158 = vpop.f32.mrf.mxu0
    %159 = vmatprep.mubr.f32.mxu0 0.0
    %160 = vmatmul.mubr.f32.gmra.mxu0 %v60
    %v161 = vpop.f32.mrf.mxu0
    %v162 = vadd.f32 %v44, %v161
    %v163 = vpop.f32.mrf.mxu0
    %164 = vmatprep.mubr.f32.mxu0 0.0
    %165 = vmatmul.mubr.f32.gmra.mxu0 %v63
    %v166 = vpop.f32.mrf.mxu0
    %v167 = vadd.f32 %v44, %v166
    %v168 = vpop.f32.mrf.mxu0
    %169 = vmatprep.mubr.f32.mxu0 0.0
    %170 = vmatmul.mubr.f32.gmra.mxu0 %v66
    %v171 = vpop.f32.mrf.mxu0
    %v172 = vadd.f32 %v44, %v171
    %v173 = vpop.f32.mrf.mxu0
    %174 = vmatprep.mubr.f32.mxu0 0.0
    %175 = vmatmul.mubr.f32.gmra.mxu0 %v69
    %v176 = vpop.f32.mrf.mxu0
    %v177 = vadd.f32 %v44, %v176
    %v178 = vpop.f32.mrf.mxu0
    %179 = vdwg.mxu0
    %vm180 = vcmask 523264
    %181 = vst.msk [vmem:[#allocation2] sm:$0xff] %vm180, %v142
    %182 = vst.msk [vmem:[#allocation2 + $0x8] sm:$0xff] %vm180, %v147
    %183 = vst.msk [vmem:[#allocation2 + $0x10] sm:$0xff] %vm180, %v152
    %184 = vst.msk [vmem:[#allocation2 + $0x18] sm:$0xff] %vm180, %v157
    %185 = vst.msk [vmem:[#allocation2 + $0x20] sm:$0xff] %vm180, %v162
    %186 = vst.msk [vmem:[#allocation2 + $0x28] sm:$0xff] %vm180, %v167
    %187 = vst.msk [vmem:[#allocation2 + $0x30] sm:$0xff] %vm180, %v172
    %188 = vst.msk [vmem:[#allocation2 + $0x38] sm:$0xff] %vm180, %v177
    %v189 = vld [vmem:[%s3] sm:$0xff]
    %v190 = vld [vmem:[%s3 + $0x8] sm:$0xff]
    %v191 = vld [vmem:[%s3 + $0x10] sm:$0xff]
    %v192 = vld [vmem:[%s3 + $0x18] sm:$0xff]
    %v193 = vld [vmem:[%s3 + $0x20] sm:$0xff]
    %v194 = vld [vmem:[%s3 + $0x28] sm:$0xff]
    %v195 = vld [vmem:[%s3 + $0x30] sm:$0xff]
    %v196 = vld [vmem:[%s3 + $0x38] sm:$0xff]
    %v197 = vld [vmem:[%s3 + $0x40] sm:$0xff]
    %v198 = vld [vmem:[%s3 + $0x48] sm:$0xff]
    %v199 = vld [vmem:[%s3 + $0x50] sm:$0xff]
    %v200 = vld [vmem:[%s3 + $0x58] sm:$0xff]
    %v201 = vld [vmem:[%s3 + $0x60] sm:$0xff]
    %v202 = vld [vmem:[%s3 + $0x68] sm:$0xff]
    %v203 = vld [vmem:[%s3 + $0x70] sm:$0xff]
    %v204 = vld [vmem:[%s3 + $0x78] sm:$0xff]
    %v205 = vld [vmem:[%s4] sm:$0x1]
    %v206 = vld [vmem:[#allocation2] sm:$0xff]
    %v207 = vtanh.pop %v206
    %v208 = vsel %vm180, %v207, 0.0
    %209 = vmatprep.subr.mxu0 0.0
    %210 = vmatpush1.msra.mxu0 %v204
    %211 = vmatprep.subr.mxu0 0.0
    %212 = vmatpush1.msra.mxu0 %v203
    %213 = vmatprep.subr.mxu0 0.0
    %214 = vmatpush1.msra.mxu0 %v202
    %215 = vmatprep.subr.mxu0 0.0
    %216 = vmatpush1.msra.mxu0 %v201
    %217 = vmatprep.subr.mxu0 0.0
    %218 = vmatpush1.msra.mxu0 %v200
    %219 = vmatprep.subr.mxu0 0.0
    %220 = vmatpush1.msra.mxu0 %v199
    %221 = vmatprep.subr.mxu0 0.0
    %222 = vmatpush1.msra.mxu0 %v198
    %223 = vmatprep.subr.mxu0 0.0
    %224 = vmatpush1.msra.mxu0 %v197
    %225 = vmatprep.subr.mxu0 0.0
    %226 = vmatpush1.msra.mxu0 %v196
    %227 = vmatprep.subr.mxu0 0.0
    %228 = vmatpush1.msra.mxu0 %v195
    %229 = vmatprep.subr.mxu0 0.0
    %230 = vmatpush1.msra.mxu0 %v194
    %231 = vmatprep.subr.mxu0 0.0
    %232 = vmatpush1.msra.mxu0 %v193
    %233 = vmatprep.subr.mxu0 0.0
    %234 = vmatpush1.msra.mxu0 %v192
    %235 = vmatprep.subr.mxu0 0.0
    %236 = vmatpush1.msra.mxu0 %v191
    %237 = vmatprep.subr.mxu0 0.0
    %238 = vmatpush1.msra.mxu0 %v190
    %239 = vmatprep.subr.mxu0 0.0
    %240 = vmatpush1.msra.mxu0 %v189
    %241 = vmatprep.subr.mxu0 0.0
    %242 = vmatpush2.msra.mxu0 0.0
    %243 = vmatprep.subr.mxu0 0.0
    %244 = vmatpush2.msra.mxu0 0.0
    %245 = vmatprep.subr.mxu0 0.0
    %246 = vmatpush2.msra.mxu0 0.0
    %247 = vmatprep.subr.mxu0 0.0
    %248 = vmatpush2.msra.mxu0 0.0
    %249 = vmatprep.subr.mxu0 0.0
    %250 = vmatpush2.msra.mxu0 0.0
    %251 = vmatprep.subr.mxu0 0.0
    %252 = vmatpush2.msra.mxu0 0.0
    %253 = vmatprep.subr.mxu0 0.0
    %254 = vmatpush2.msra.mxu0 0.0
    %255 = vmatprep.subr.mxu0 0.0
    %256 = vmatpush2.msra.mxu0 0.0
    %257 = vmatprep.subr.mxu0 0.0
    %258 = vmatpush2.msra.mxu0 0.0
    %259 = vmatprep.subr.mxu0 0.0
    %260 = vmatpush2.msra.mxu0 0.0
    %261 = vmatprep.subr.mxu0 0.0
    %262 = vmatpush2.msra.mxu0 0.0
    %263 = vmatprep.subr.mxu0 0.0
    %264 = vmatpush2.msra.mxu0 0.0
    %265 = vmatprep.subr.mxu0 0.0
    %266 = vmatpush2.msra.mxu0 0.0
    %267 = vmatprep.subr.mxu0 0.0
    %268 = vmatpush2.msra.mxu0 0.0
    %269 = vmatprep.subr.mxu0 0.0
    %270 = vmatpush2.msra.mxu0 0.0
    %271 = vmatprep.subr.mxu0 0.0
    %272 = vmatpush2.msra.mxu0 0.0
    %273 = vmatprep.mubr.f32.mxu0 0.0
    %274 = vmatmul.mubr.f32.gmra.mxu0 %v208
    %v275 = vpop.f32.mrf.mxu0
    %v276 = vadd.f32 0.0, %v275
    %v277 = vpop.f32.mrf.mxu0
    %278 = vdwg.mxu0
    %v279 = vld [vmem:[#allocation2 + $0x8] sm:$0xff]
    %v280 = vadd.f32 %v279, %v276
    %v281 = vtanh.pop %v280
    %v283 = vlaneseq
    %v284 = vshrl.u32 %v283, 7
    %v285 = vsub.s32 0, %v284
    %v286 = vrot.slane %v205, %v285
    %288 = vrot.lane.b32.xlu0 %v286, 64
    %v289 = vpop.permute.xlu0 %288
    %v291 = vadd.f32 %v276, %v289
    %v292 = vtanh.pop %v291
    %v293 = vsel %vm180, %v281, %v292
    %294 = vmatprep.subr.mxu0 0.0
    %295 = vmatpush1.msra.mxu0 %v204
    %296 = vmatprep.subr.mxu0 0.0
    %297 = vmatpush1.msra.mxu0 %v203
    %298 = vmatprep.subr.mxu0 0.0
    %299 = vmatpush1.msra.mxu0 %v202
    %300 = vmatprep.subr.mxu0 0.0
    %301 = vmatpush1.msra.mxu0 %v201
    %302 = vmatprep.subr.mxu0 0.0
    %303 = vmatpush1.msra.mxu0 %v200
    %304 = vmatprep.subr.mxu0 0.0
    %305 = vmatpush1.msra.mxu0 %v199
    %306 = vmatprep.subr.mxu0 0.0
    %307 = vmatpush1.msra.mxu0 %v198
    %308 = vmatprep.subr.mxu0 0.0
    %309 = vmatpush1.msra.mxu0 %v197
    %310 = vmatprep.subr.mxu0 0.0
    %311 = vmatpush1.msra.mxu0 %v196
    %312 = vmatprep.subr.mxu0 0.0
    %313 = vmatpush1.msra.mxu0 %v195
    %314 = vmatprep.subr.mxu0 0.0
    %315 = vmatpush1.msra.mxu0 %v194
    %316 = vmatprep.subr.mxu0 0.0
    %317 = vmatpush1.msra.mxu0 %v193
    %318 = vmatprep.subr.mxu0 0.0
    %319 = vmatpush1.msra.mxu0 %v192
    %320 = vmatprep.subr.mxu0 0.0
    %321 = vmatpush1.msra.mxu0 %v191
    %322 = vmatprep.subr.mxu0 0.0
    %323 = vmatpush1.msra.mxu0 %v190
    %324 = vmatprep.subr.mxu0 0.0
    %325 = vmatpush1.msra.mxu0 %v189
    %326 = vmatprep.subr.mxu0 0.0
    %327 = vmatpush2.msra.mxu0 0.0
    %328 = vmatprep.subr.mxu0 0.0
    %329 = vmatpush2.msra.mxu0 0.0
    %330 = vmatprep.subr.mxu0 0.0
    %331 = vmatpush2.msra.mxu0 0.0
    %332 = vmatprep.subr.mxu0 0.0
    %333 = vmatpush2.msra.mxu0 0.0
    %334 = vmatprep.subr.mxu0 0.0
    %335 = vmatpush2.msra.mxu0 0.0
    %336 = vmatprep.subr.mxu0 0.0
    %337 = vmatpush2.msra.mxu0 0.0
    %338 = vmatprep.subr.mxu0 0.0
    %339 = vmatpush2.msra.mxu0 0.0
    %340 = vmatprep.subr.mxu0 0.0
    %341 = vmatpush2.msra.mxu0 0.0
    %342 = vmatprep.subr.mxu0 0.0
    %343 = vmatpush2.msra.mxu0 0.0
    %344 = vmatprep.subr.mxu0 0.0
    %345 = vmatpush2.msra.mxu0 0.0
    %346 = vmatprep.subr.mxu0 0.0
    %347 = vmatpush2.msra.mxu0 0.0
    %348 = vmatprep.subr.mxu0 0.0
    %349 = vmatpush2.msra.mxu0 0.0
    %350 = vmatprep.subr.mxu0 0.0
    %351 = vmatpush2.msra.mxu0 0.0
    %352 = vmatprep.subr.mxu0 0.0
    %353 = vmatpush2.msra.mxu0 0.0
    %354 = vmatprep.subr.mxu0 0.0
    %355 = vmatpush2.msra.mxu0 0.0
    %356 = vmatprep.subr.mxu0 0.0
    %357 = vmatpush2.msra.mxu0 0.0
    %358 = vmatprep.mubr.f32.mxu0 0.0
    %359 = vmatmul.mubr.f32.gmra.mxu0 %v293
    %v360 = vpop.f32.mrf.mxu0
    %v361 = vadd.f32 0.0, %v360
    %v362 = vpop.f32.mrf.mxu0
    %363 = vdwg.mxu0
    %v364 = vld [vmem:[#allocation2 + $0x10] sm:$0xff]
    %v365 = vadd.f32 %v364, %v361
    %v366 = vtanh.pop %v365
    %v367 = vadd.f32 %v361, %v289
    %v368 = vtanh.pop %v367
    %v369 = vsel %vm180, %v366, %v368
    %370 = vmatprep.subr.mxu0 0.0
    %371 = vmatpush1.msra.mxu0 %v204
    %372 = vmatprep.subr.mxu0 0.0
    %373 = vmatpush1.msra.mxu0 %v203
    %374 = vmatprep.subr.mxu0 0.0
    %375 = vmatpush1.msra.mxu0 %v202
    %376 = vmatprep.subr.mxu0 0.0
    %377 = vmatpush1.msra.mxu0 %v201
    %378 = vmatprep.subr.mxu0 0.0
    %379 = vmatpush1.msra.mxu0 %v200
    %380 = vmatprep.subr.mxu0 0.0
    %381 = vmatpush1.msra.mxu0 %v199
    %382 = vmatprep.subr.mxu0 0.0
    %383 = vmatpush1.msra.mxu0 %v198
    %384 = vmatprep.subr.mxu0 0.0
    %385 = vmatpush1.msra.mxu0 %v197
    %386 = vmatprep.subr.mxu0 0.0
    %387 = vmatpush1.msra.mxu0 %v196
    %388 = vmatprep.subr.mxu0 0.0
    %389 = vmatpush1.msra.mxu0 %v195
    %390 = vmatprep.subr.mxu0 0.0
    %391 = vmatpush1.msra.mxu0 %v194
    %392 = vmatprep.subr.mxu0 0.0
    %393 = vmatpush1.msra.mxu0 %v193
    %394 = vmatprep.subr.mxu0 0.0
    %395 = vmatpush1.msra.mxu0 %v192
    %396 = vmatprep.subr.mxu0 0.0
    %397 = vmatpush1.msra.mxu0 %v191
    %398 = vmatprep.subr.mxu0 0.0
    %399 = vmatpush1.msra.mxu0 %v190
    %400 = vmatprep.subr.mxu0 0.0
    %401 = vmatpush1.msra.mxu0 %v189
    %402 = vmatprep.subr.mxu0 0.0
    %403 = vmatpush2.msra.mxu0 0.0
    %404 = vmatprep.subr.mxu0 0.0
    %405 = vmatpush2.msra.mxu0 0.0
    %406 = vmatprep.subr.mxu0 0.0
    %407 = vmatpush2.msra.mxu0 0.0
    %408 = vmatprep.subr.mxu0 0.0
    %409 = vmatpush2.msra.mxu0 0.0
    %410 = vmatprep.subr.mxu0 0.0
    %411 = vmatpush2.msra.mxu0 0.0
    %412 = vmatprep.subr.mxu0 0.0
    %413 = vmatpush2.msra.mxu0 0.0
    %414 = vmatprep.subr.mxu0 0.0
    %415 = vmatpush2.msra.mxu0 0.0
    %416 = vmatprep.subr.mxu0 0.0
    %417 = vmatpush2.msra.mxu0 0.0
    %418 = vmatprep.subr.mxu0 0.0
    %419 = vmatpush2.msra.mxu0 0.0
    %420 = vmatprep.subr.mxu0 0.0
    %421 = vmatpush2.msra.mxu0 0.0
    %422 = vmatprep.subr.mxu0 0.0
    %423 = vmatpush2.msra.mxu0 0.0
    %424 = vmatprep.subr.mxu0 0.0
    %425 = vmatpush2.msra.mxu0 0.0
    %426 = vmatprep.subr.mxu0 0.0
    %427 = vmatpush2.msra.mxu0 0.0
    %428 = vmatprep.subr.mxu0 0.0
    %429 = vmatpush2.msra.mxu0 0.0
    %430 = vmatprep.subr.mxu0 0.0
    %431 = vmatpush2.msra.mxu0 0.0
    %432 = vmatprep.subr.mxu0 0.0
    %433 = vmatpush2.msra.mxu0 0.0
    %434 = vmatprep.mubr.f32.mxu0 0.0
    %435 = vmatmul.mubr.f32.gmra.mxu0 %v369
    %v436 = vpop.f32.mrf.mxu0
    %v437 = vadd.f32 0.0, %v436
    %v438 = vpop.f32.mrf.mxu0
    %439 = vdwg.mxu0
    %v440 = vld [vmem:[#allocation2 + $0x18] sm:$0xff]
    %v441 = vadd.f32 %v440, %v437
    %v442 = vtanh.pop %v441
    %v443 = vadd.f32 %v437, %v289
    %v444 = vtanh.pop %v443
    %v445 = vsel %vm180, %v442, %v444
    %446 = vmatprep.subr.mxu0 0.0
    %447 = vmatpush1.msra.mxu0 %v204
    %448 = vmatprep.subr.mxu0 0.0
    %449 = vmatpush1.msra.mxu0 %v203
    %450 = vmatprep.subr.mxu0 0.0
    %451 = vmatpush1.msra.mxu0 %v202
    %452 = vmatprep.subr.mxu0 0.0
    %453 = vmatpush1.msra.mxu0 %v201
    %454 = vmatprep.subr.mxu0 0.0
    %455 = vmatpush1.msra.mxu0 %v200
    %456 = vmatprep.subr.mxu0 0.0
    %457 = vmatpush1.msra.mxu0 %v199
    %458 = vmatprep.subr.mxu0 0.0
    %459 = vmatpush1.msra.mxu0 %v198
    %460 = vmatprep.subr.mxu0 0.0
    %461 = vmatpush1.msra.mxu0 %v197
    %462 = vmatprep.subr.mxu0 0.0
    %463 = vmatpush1.msra.mxu0 %v196
    %464 = vmatprep.subr.mxu0 0.0
    %465 = vmatpush1.msra.mxu0 %v195
    %466 = vmatprep.subr.mxu0 0.0
    %467 = vmatpush1.msra.mxu0 %v194
    %468 = vmatprep.subr.mxu0 0.0
    %469 = vmatpush1.msra.mxu0 %v193
    %470 = vmatprep.subr.mxu0 0.0
    %471 = vmatpush1.msra.mxu0 %v192
    %472 = vmatprep.subr.mxu0 0.0
    %473 = vmatpush1.msra.mxu0 %v191
    %474 = vmatprep.subr.mxu0 0.0
    %475 = vmatpush1.msra.mxu0 %v190
    %476 = vmatprep.subr.mxu0 0.0
    %477 = vmatpush1.msra.mxu0 %v189
    %478 = vmatprep.subr.mxu0 0.0
    %479 = vmatpush2.msra.mxu0 0.0
    %480 = vmatprep.subr.mxu0 0.0
    %481 = vmatpush2.msra.mxu0 0.0
    %482 = vmatprep.subr.mxu0 0.0
    %483 = vmatpush2.msra.mxu0 0.0
    %484 = vmatprep.subr.mxu0 0.0
    %485 = vmatpush2.msra.mxu0 0.0
    %486 = vmatprep.subr.mxu0 0.0
    %487 = vmatpush2.msra.mxu0 0.0
    %488 = vmatprep.subr.mxu0 0.0
    %489 = vmatpush2.msra.mxu0 0.0
    %490 = vmatprep.subr.mxu0 0.0
    %491 = vmatpush2.msra.mxu0 0.0
    %492 = vmatprep.subr.mxu0 0.0
    %493 = vmatpush2.msra.mxu0 0.0
    %494 = vmatprep.subr.mxu0 0.0
    %495 = vmatpush2.msra.mxu0 0.0
    %496 = vmatprep.subr.mxu0 0.0
    %497 = vmatpush2.msra.mxu0 0.0
    %498 = vmatprep.subr.mxu0 0.0
    %499 = vmatpush2.msra.mxu0 0.0
    %500 = vmatprep.subr.mxu0 0.0
    %501 = vmatpush2.msra.mxu0 0.0
    %502 = vmatprep.subr.mxu0 0.0
    %503 = vmatpush2.msra.mxu0 0.0
    %504 = vmatprep.subr.mxu0 0.0
    %505 = vmatpush2.msra.mxu0 0.0
    %506 = vmatprep.subr.mxu0 0.0
    %507 = vmatpush2.msra.mxu0 0.0
    %508 = vmatprep.subr.mxu0 0.0
    %509 = vmatpush2.msra.mxu0 0.0
    %510 = vmatprep.mubr.f32.mxu0 0.0
    %511 = vmatmul.mubr.f32.gmra.mxu0 %v445
    %v512 = vpop.f32.mrf.mxu0
    %v513 = vadd.f32 0.0, %v512
    %v514 = vpop.f32.mrf.mxu0
    %515 = vdwg.mxu0
    %v516 = vld [vmem:[#allocation2 + $0x20] sm:$0xff]
    %v517 = vadd.f32 %v516, %v513
    %v518 = vtanh.pop %v517
    %v519 = vadd.f32 %v513, %v289
    %v520 = vtanh.pop %v519
    %v521 = vsel %vm180, %v518, %v520
    %522 = vmatprep.subr.mxu0 0.0
    %523 = vmatpush1.msra.mxu0 %v204
    %524 = vmatprep.subr.mxu0 0.0
    %525 = vmatpush1.msra.mxu0 %v203
    %526 = vmatprep.subr.mxu0 0.0
    %527 = vmatpush1.msra.mxu0 %v202
    %528 = vmatprep.subr.mxu0 0.0
    %529 = vmatpush1.msra.mxu0 %v201
    %530 = vmatprep.subr.mxu0 0.0
    %531 = vmatpush1.msra.mxu0 %v200
    %532 = vmatprep.subr.mxu0 0.0
    %533 = vmatpush1.msra.mxu0 %v199
    %534 = vmatprep.subr.mxu0 0.0
    %535 = vmatpush1.msra.mxu0 %v198
    %536 = vmatprep.subr.mxu0 0.0
    %537 = vmatpush1.msra.mxu0 %v197
    %538 = vmatprep.subr.mxu0 0.0
    %539 = vmatpush1.msra.mxu0 %v196
    %540 = vmatprep.subr.mxu0 0.0
    %541 = vmatpush1.msra.mxu0 %v195
    %542 = vmatprep.subr.mxu0 0.0
    %543 = vmatpush1.msra.mxu0 %v194
    %544 = vmatprep.subr.mxu0 0.0
    %545 = vmatpush1.msra.mxu0 %v193
    %546 = vmatprep.subr.mxu0 0.0
    %547 = vmatpush1.msra.mxu0 %v192
    %548 = vmatprep.subr.mxu0 0.0
    %549 = vmatpush1.msra.mxu0 %v191
    %550 = vmatprep.subr.mxu0 0.0
    %551 = vmatpush1.msra.mxu0 %v190
    %552 = vmatprep.subr.mxu0 0.0
    %553 = vmatpush1.msra.mxu0 %v189
    %554 = vmatprep.subr.mxu0 0.0
    %555 = vmatpush2.msra.mxu0 0.0
    %556 = vmatprep.subr.mxu0 0.0
    %557 = vmatpush2.msra.mxu0 0.0
    %558 = vmatprep.subr.mxu0 0.0
    %559 = vmatpush2.msra.mxu0 0.0
    %560 = vmatprep.subr.mxu0 0.0
    %561 = vmatpush2.msra.mxu0 0.0
    %562 = vmatprep.subr.mxu0 0.0
    %563 = vmatpush2.msra.mxu0 0.0
    %564 = vmatprep.subr.mxu0 0.0
    %565 = vmatpush2.msra.mxu0 0.0
    %566 = vmatprep.subr.mxu0 0.0
    %567 = vmatpush2.msra.mxu0 0.0
    %568 = vmatprep.subr.mxu0 0.0
    %569 = vmatpush2.msra.mxu0 0.0
    %570 = vmatprep.subr.mxu0 0.0
    %571 = vmatpush2.msra.mxu0 0.0
    %572 = vmatprep.subr.mxu0 0.0
    %573 = vmatpush2.msra.mxu0 0.0
    %574 = vmatprep.subr.mxu0 0.0
    %575 = vmatpush2.msra.mxu0 0.0
    %576 = vmatprep.subr.mxu0 0.0
    %577 = vmatpush2.msra.mxu0 0.0
    %578 = vmatprep.subr.mxu0 0.0
    %579 = vmatpush2.msra.mxu0 0.0
    %580 = vmatprep.subr.mxu0 0.0
    %581 = vmatpush2.msra.mxu0 0.0
    %582 = vmatprep.subr.mxu0 0.0
    %583 = vmatpush2.msra.mxu0 0.0
    %584 = vmatprep.subr.mxu0 0.0
    %585 = vmatpush2.msra.mxu0 0.0
    %586 = vmatprep.mubr.f32.mxu0 0.0
    %587 = vmatmul.mubr.f32.gmra.mxu0 %v521
    %v588 = vpop.f32.mrf.mxu0
    %v589 = vadd.f32 0.0, %v588
    %v590 = vpop.f32.mrf.mxu0
    %591 = vdwg.mxu0
    %v592 = vld [vmem:[#allocation2 + $0x28] sm:$0xff]
    %v593 = vadd.f32 %v592, %v589
    %v594 = vtanh.pop %v593
    %v595 = vadd.f32 %v589, %v289
    %v596 = vtanh.pop %v595
    %v597 = vsel %vm180, %v594, %v596
    %598 = vmatprep.subr.mxu0 0.0
    %599 = vmatpush1.msra.mxu0 %v204
    %600 = vmatprep.subr.mxu0 0.0
    %601 = vmatpush1.msra.mxu0 %v203
    %602 = vmatprep.subr.mxu0 0.0
    %603 = vmatpush1.msra.mxu0 %v202
    %604 = vmatprep.subr.mxu0 0.0
    %605 = vmatpush1.msra.mxu0 %v201
    %606 = vmatprep.subr.mxu0 0.0
    %607 = vmatpush1.msra.mxu0 %v200
    %608 = vmatprep.subr.mxu0 0.0
    %609 = vmatpush1.msra.mxu0 %v199
    %610 = vmatprep.subr.mxu0 0.0
    %611 = vmatpush1.msra.mxu0 %v198
    %612 = vmatprep.subr.mxu0 0.0
    %613 = vmatpush1.msra.mxu0 %v197
    %614 = vmatprep.subr.mxu0 0.0
    %615 = vmatpush1.msra.mxu0 %v196
    %616 = vmatprep.subr.mxu0 0.0
    %617 = vmatpush1.msra.mxu0 %v195
    %618 = vmatprep.subr.mxu0 0.0
    %619 = vmatpush1.msra.mxu0 %v194
    %620 = vmatprep.subr.mxu0 0.0
    %621 = vmatpush1.msra.mxu0 %v193
    %622 = vmatprep.subr.mxu0 0.0
    %623 = vmatpush1.msra.mxu0 %v192
    %624 = vmatprep.subr.mxu0 0.0
    %625 = vmatpush1.msra.mxu0 %v191
    %626 = vmatprep.subr.mxu0 0.0
    %627 = vmatpush1.msra.mxu0 %v190
    %628 = vmatprep.subr.mxu0 0.0
    %629 = vmatpush1.msra.mxu0 %v189
    %630 = vmatprep.subr.mxu0 0.0
    %631 = vmatpush2.msra.mxu0 0.0
    %632 = vmatprep.subr.mxu0 0.0
    %633 = vmatpush2.msra.mxu0 0.0
    %634 = vmatprep.subr.mxu0 0.0
    %635 = vmatpush2.msra.mxu0 0.0
    %636 = vmatprep.subr.mxu0 0.0
    %637 = vmatpush2.msra.mxu0 0.0
    %638 = vmatprep.subr.mxu0 0.0
    %639 = vmatpush2.msra.mxu0 0.0
    %640 = vmatprep.subr.mxu0 0.0
    %641 = vmatpush2.msra.mxu0 0.0
    %642 = vmatprep.subr.mxu0 0.0
    %643 = vmatpush2.msra.mxu0 0.0
    %644 = vmatprep.subr.mxu0 0.0
    %645 = vmatpush2.msra.mxu0 0.0
    %646 = vmatprep.subr.mxu0 0.0
    %647 = vmatpush2.msra.mxu0 0.0
    %648 = vmatprep.subr.mxu0 0.0
    %649 = vmatpush2.msra.mxu0 0.0
    %650 = vmatprep.subr.mxu0 0.0
    %651 = vmatpush2.msra.mxu0 0.0
    %652 = vmatprep.subr.mxu0 0.0
    %653 = vmatpush2.msra.mxu0 0.0
    %654 = vmatprep.subr.mxu0 0.0
    %655 = vmatpush2.msra.mxu0 0.0
    %656 = vmatprep.subr.mxu0 0.0
    %657 = vmatpush2.msra.mxu0 0.0
    %658 = vmatprep.subr.mxu0 0.0
    %659 = vmatpush2.msra.mxu0 0.0
    %660 = vmatprep.subr.mxu0 0.0
    %661 = vmatpush2.msra.mxu0 0.0
    %662 = vmatprep.mubr.f32.mxu0 0.0
    %663 = vmatmul.mubr.f32.gmra.mxu0 %v597
    %v664 = vpop.f32.mrf.mxu0
    %v665 = vadd.f32 0.0, %v664
    %v666 = vpop.f32.mrf.mxu0
    %667 = vdwg.mxu0
    %v668 = vld [vmem:[#allocation2 + $0x30] sm:$0xff]
    %v669 = vadd.f32 %v668, %v665
    %v670 = vtanh.pop %v669
    %v671 = vadd.f32 %v665, %v289
    %v672 = vtanh.pop %v671
    %v673 = vsel %vm180, %v670, %v672
    %674 = vmatprep.subr.mxu0 0.0
    %675 = vmatpush1.msra.mxu0 %v204
    %676 = vmatprep.subr.mxu0 0.0
    %677 = vmatpush1.msra.mxu0 %v203
    %678 = vmatprep.subr.mxu0 0.0
    %679 = vmatpush1.msra.mxu0 %v202
    %680 = vmatprep.subr.mxu0 0.0
    %681 = vmatpush1.msra.mxu0 %v201
    %682 = vmatprep.subr.mxu0 0.0
    %683 = vmatpush1.msra.mxu0 %v200
    %684 = vmatprep.subr.mxu0 0.0
    %685 = vmatpush1.msra.mxu0 %v199
    %686 = vmatprep.subr.mxu0 0.0
    %687 = vmatpush1.msra.mxu0 %v198
    %688 = vmatprep.subr.mxu0 0.0
    %689 = vmatpush1.msra.mxu0 %v197
    %690 = vmatprep.subr.mxu0 0.0
    %691 = vmatpush1.msra.mxu0 %v196
    %692 = vmatprep.subr.mxu0 0.0
    %693 = vmatpush1.msra.mxu0 %v195
    %694 = vmatprep.subr.mxu0 0.0
    %695 = vmatpush1.msra.mxu0 %v194
    %696 = vmatprep.subr.mxu0 0.0
    %697 = vmatpush1.msra.mxu0 %v193
    %698 = vmatprep.subr.mxu0 0.0
    %699 = vmatpush1.msra.mxu0 %v192
    %700 = vmatprep.subr.mxu0 0.0
    %701 = vmatpush1.msra.mxu0 %v191
    %702 = vmatprep.subr.mxu0 0.0
    %703 = vmatpush1.msra.mxu0 %v190
    %704 = vmatprep.subr.mxu0 0.0
    %705 = vmatpush1.msra.mxu0 %v189
    %706 = vmatprep.subr.mxu0 0.0
    %707 = vmatpush2.msra.mxu0 0.0
    %708 = vmatprep.subr.mxu0 0.0
    %709 = vmatpush2.msra.mxu0 0.0
    %710 = vmatprep.subr.mxu0 0.0
    %711 = vmatpush2.msra.mxu0 0.0
    %712 = vmatprep.subr.mxu0 0.0
    %713 = vmatpush2.msra.mxu0 0.0
    %714 = vmatprep.subr.mxu0 0.0
    %715 = vmatpush2.msra.mxu0 0.0
    %716 = vmatprep.subr.mxu0 0.0
    %717 = vmatpush2.msra.mxu0 0.0
    %718 = vmatprep.subr.mxu0 0.0
    %719 = vmatpush2.msra.mxu0 0.0
    %720 = vmatprep.subr.mxu0 0.0
    %721 = vmatpush2.msra.mxu0 0.0
    %722 = vmatprep.subr.mxu0 0.0
    %723 = vmatpush2.msra.mxu0 0.0
    %724 = vmatprep.subr.mxu0 0.0
    %725 = vmatpush2.msra.mxu0 0.0
    %726 = vmatprep.subr.mxu0 0.0
    %727 = vmatpush2.msra.mxu0 0.0
    %728 = vmatprep.subr.mxu0 0.0
    %729 = vmatpush2.msra.mxu0 0.0
    %730 = vmatprep.subr.mxu0 0.0
    %731 = vmatpush2.msra.mxu0 0.0
    %732 = vmatprep.subr.mxu0 0.0
    %733 = vmatpush2.msra.mxu0 0.0
    %734 = vmatprep.subr.mxu0 0.0
    %735 = vmatpush2.msra.mxu0 0.0
    %736 = vmatprep.subr.mxu0 0.0
    %737 = vmatpush2.msra.mxu0 0.0
    %738 = vmatprep.mubr.f32.mxu0 0.0
    %739 = vmatmul.mubr.f32.gmra.mxu0 %v673
    %v740 = vpop.f32.mrf.mxu0
    %v741 = vadd.f32 0.0, %v740
    %v742 = vpop.f32.mrf.mxu0
    %743 = vdwg.mxu0
    %v744 = vld [vmem:[#allocation2 + $0x38] sm:$0xff]
    %v745 = vadd.f32 %v744, %v741
    %v746 = vtanh.pop %v745
    %v747 = vadd.f32 %v741, %v289
    %v748 = vtanh.pop %v747
    %v749 = vsel %vm180, %v746, %v748
    %766 = vrot.lane.b32.xlu0 %v189, 64
    %v767 = vpop.permute.xlu0 %766
    %768 = vrot.lane.b32.xlu0 %v190, 64
    %v769 = vpop.permute.xlu0 %768
    %770 = vrot.lane.b32.xlu0 %v191, 64
    %v771 = vpop.permute.xlu0 %770
    %772 = vrot.lane.b32.xlu0 %v192, 64
    %v773 = vpop.permute.xlu0 %772
    %774 = vrot.lane.b32.xlu0 %v193, 64
    %v775 = vpop.permute.xlu0 %774
    %776 = vrot.lane.b32.xlu0 %v194, 64
    %v777 = vpop.permute.xlu0 %776
    %778 = vrot.lane.b32.xlu0 %v195, 64
    %v779 = vpop.permute.xlu0 %778
    %780 = vrot.lane.b32.xlu0 %v196, 64
    %v781 = vpop.permute.xlu0 %780
    %782 = vrot.lane.b32.xlu0 %v197, 64
    %v783 = vpop.permute.xlu0 %782
    %784 = vrot.lane.b32.xlu0 %v198, 64
    %v785 = vpop.permute.xlu0 %784
    %786 = vrot.lane.b32.xlu0 %v199, 64
    %v787 = vpop.permute.xlu0 %786
    %788 = vrot.lane.b32.xlu0 %v200, 64
    %v789 = vpop.permute.xlu0 %788
    %790 = vrot.lane.b32.xlu0 %v201, 64
    %v791 = vpop.permute.xlu0 %790
    %792 = vrot.lane.b32.xlu0 %v202, 64
    %v793 = vpop.permute.xlu0 %792
    %794 = vrot.lane.b32.xlu0 %v203, 64
    %v795 = vpop.permute.xlu0 %794
    %796 = vrot.lane.b32.xlu0 %v204, 64
    %v797 = vpop.permute.xlu0 %796
    %814 = vmatprep.subr.mxu0 0.0
    %815 = vmatpush1.msra.mxu0 %v797
    %816 = vmatprep.subr.mxu0 0.0
    %817 = vmatpush1.msra.mxu0 %v795
    %818 = vmatprep.subr.mxu0 0.0
    %819 = vmatpush1.msra.mxu0 %v793
    %820 = vmatprep.subr.mxu0 0.0
    %821 = vmatpush1.msra.mxu0 %v791
    %822 = vmatprep.subr.mxu0 0.0
    %823 = vmatpush1.msra.mxu0 %v789
    %824 = vmatprep.subr.mxu0 0.0
    %825 = vmatpush1.msra.mxu0 %v787
    %826 = vmatprep.subr.mxu0 0.0
    %827 = vmatpush1.msra.mxu0 %v785
    %828 = vmatprep.subr.mxu0 0.0
    %829 = vmatpush1.msra.mxu0 %v783
    %830 = vmatprep.subr.mxu0 0.0
    %831 = vmatpush1.msra.mxu0 %v781
    %832 = vmatprep.subr.mxu0 0.0
    %833 = vmatpush1.msra.mxu0 %v779
    %834 = vmatprep.subr.mxu0 0.0
    %835 = vmatpush1.msra.mxu0 %v777
    %836 = vmatprep.subr.mxu0 0.0
    %837 = vmatpush1.msra.mxu0 %v775
    %838 = vmatprep.subr.mxu0 0.0
    %839 = vmatpush1.msra.mxu0 %v773
    %840 = vmatprep.subr.mxu0 0.0
    %841 = vmatpush1.msra.mxu0 %v771
    %842 = vmatprep.subr.mxu0 0.0
    %843 = vmatpush1.msra.mxu0 %v769
    %844 = vmatprep.subr.mxu0 0.0
    %845 = vmatpush1.msra.mxu0 %v767
    %846 = vmatprep.subr.mxu0 0.0
    %847 = vmatpush2.msra.mxu0 0.0
    %848 = vmatprep.subr.mxu0 0.0
    %849 = vmatpush2.msra.mxu0 0.0
    %850 = vmatprep.subr.mxu0 0.0
    %851 = vmatpush2.msra.mxu0 0.0
    %852 = vmatprep.subr.mxu0 0.0
    %853 = vmatpush2.msra.mxu0 0.0
    %854 = vmatprep.subr.mxu0 0.0
    %855 = vmatpush2.msra.mxu0 0.0
    %856 = vmatprep.subr.mxu0 0.0
    %857 = vmatpush2.msra.mxu0 0.0
    %858 = vmatprep.subr.mxu0 0.0
    %859 = vmatpush2.msra.mxu0 0.0
    %860 = vmatprep.subr.mxu0 0.0
    %861 = vmatpush2.msra.mxu0 0.0
    %862 = vmatprep.subr.mxu0 0.0
    %863 = vmatpush2.msra.mxu0 0.0
    %864 = vmatprep.subr.mxu0 0.0
    %865 = vmatpush2.msra.mxu0 0.0
    %866 = vmatprep.subr.mxu0 0.0
    %867 = vmatpush2.msra.mxu0 0.0
    %868 = vmatprep.subr.mxu0 0.0
    %869 = vmatpush2.msra.mxu0 0.0
    %870 = vmatprep.subr.mxu0 0.0
    %871 = vmatpush2.msra.mxu0 0.0
    %872 = vmatprep.subr.mxu0 0.0
    %873 = vmatpush2.msra.mxu0 0.0
    %874 = vmatprep.subr.mxu0 0.0
    %875 = vmatpush2.msra.mxu0 0.0
    %876 = vmatprep.subr.mxu0 0.0
    %877 = vmatpush2.msra.mxu0 0.0
    %878 = vmatprep.mubr.f32.mxu0 0.0
    %879 = vmatmul.mubr.f32.gmra.mxu0 %v749
    %v880 = vpop.f32.mrf.mxu0
    %v881 = vadd.f32 %v286, %v880
    %v882 = vpop.f32.mrf.mxu0
    %883 = vdwg.mxu0
    %v884 = vtanh.pop %v881
    %v885 = vld [vmem:[%s5] sm:$0xff]
    %v886 = vld [vmem:[%s5 + $0x8] sm:$0xff]
    %v887 = vld [vmem:[%s5 + $0x10] sm:$0xff]
    %v888 = vld [vmem:[%s5 + $0x18] sm:$0xff]
    %v889 = vld [vmem:[%s5 + $0x20] sm:$0xff]
    %v890 = vld [vmem:[%s5 + $0x28] sm:$0xff]
    %v891 = vld [vmem:[%s5 + $0x30] sm:$0xff]
    %v892 = vld [vmem:[%s5 + $0x38] sm:$0xff]
    %v893 = vld [vmem:[%s6] sm:$0x1]
    %v895 = vlaneseq
    %v896 = vshrl.u32 %v895, 7
    %v897 = vsub.s32 0, %v896
    %v898 = vrot.slane %v893, %v897
    %v901 = vsel %vm180, %v884, 0
    %903 = vmatprep.subr.mxu0 0.0
    %904 = vmatpush1.msra.mxu0 0.0
    %905 = vmatprep.subr.mxu0 0.0
    %906 = vmatpush1.msra.mxu0 0.0
    %907 = vmatprep.subr.mxu0 0.0
    %908 = vmatpush1.msra.mxu0 0.0
    %909 = vmatprep.subr.mxu0 0.0
    %910 = vmatpush1.msra.mxu0 0.0
    %911 = vmatprep.subr.mxu0 0.0
    %912 = vmatpush1.msra.mxu0 0.0
    %913 = vmatprep.subr.mxu0 0.0
    %914 = vmatpush1.msra.mxu0 0.0
    %915 = vmatprep.subr.mxu0 0.0
    %916 = vmatpush1.msra.mxu0 0.0
    %917 = vmatprep.subr.mxu0 0.0
    %918 = vmatpush1.msra.mxu0 0.0
    %919 = vmatprep.subr.mxu0 0.0
    %920 = vmatpush1.msra.mxu0 %v892
    %921 = vmatprep.subr.mxu0 0.0
    %922 = vmatpush1.msra.mxu0 %v891
    %923 = vmatprep.subr.mxu0 0.0
    %924 = vmatpush1.msra.mxu0 %v890
    %925 = vmatprep.subr.mxu0 0.0
    %926 = vmatpush1.msra.mxu0 %v889
    %927 = vmatprep.subr.mxu0 0.0
    %928 = vmatpush1.msra.mxu0 %v888
    %929 = vmatprep.subr.mxu0 0.0
    %930 = vmatpush1.msra.mxu0 %v887
    %931 = vmatprep.subr.mxu0 0.0
    %932 = vmatpush1.msra.mxu0 %v886
    %933 = vmatprep.subr.mxu0 0.0
    %934 = vmatpush1.msra.mxu0 %v885
    %935 = vmatprep.subr.mxu0 0.0
    %936 = vmatpush2.msra.mxu0 0.0
    %937 = vmatprep.subr.mxu0 0.0
    %938 = vmatpush2.msra.mxu0 0.0
    %939 = vmatprep.subr.mxu0 0.0
    %940 = vmatpush2.msra.mxu0 0.0
    %941 = vmatprep.subr.mxu0 0.0
    %942 = vmatpush2.msra.mxu0 0.0
    %943 = vmatprep.subr.mxu0 0.0
    %944 = vmatpush2.msra.mxu0 0.0
    %945 = vmatprep.subr.mxu0 0.0
    %946 = vmatpush2.msra.mxu0 0.0
    %947 = vmatprep.subr.mxu0 0.0
    %948 = vmatpush2.msra.mxu0 0.0
    %949 = vmatprep.subr.mxu0 0.0
    %950 = vmatpush2.msra.mxu0 0.0
    %951 = vmatprep.subr.mxu0 0.0
    %952 = vmatpush2.msra.mxu0 0.0
    %953 = vmatprep.subr.mxu0 0.0
    %954 = vmatpush2.msra.mxu0 0.0
    %955 = vmatprep.subr.mxu0 0.0
    %956 = vmatpush2.msra.mxu0 0.0
    %957 = vmatprep.subr.mxu0 0.0
    %958 = vmatpush2.msra.mxu0 0.0
    %959 = vmatprep.subr.mxu0 0.0
    %960 = vmatpush2.msra.mxu0 0.0
    %961 = vmatprep.subr.mxu0 0.0
    %962 = vmatpush2.msra.mxu0 0.0
    %963 = vmatprep.subr.mxu0 0.0
    %964 = vmatpush2.msra.mxu0 0.0
    %965 = vmatprep.subr.mxu0 0.0
    %966 = vmatpush2.msra.mxu0 0.0
    %967 = vmatprep.mubr.f32.mxu0 0.0
    %968 = vmatmul.mubr.f32.gmra.mxu0 %v901
    %v969 = vpop.f32.mrf.mxu0
    %v970 = vadd.f32 %v898, %v969
    %v971 = vpop.f32.mrf.mxu0
    %972 = vdwg.mxu0
    %vm973 = vcmask 80896
    %974 = vst.msk [vmem:[#allocation3] sm:$0xff] %vm973, %v970
    // Predicated region
    $region30: #{tpu_custom_call.1} parent=1 // pred_check
      _
    $region31: #{tpu_custom_call.1} parent=1 // pred_check_branch
      %976 = sbr.rel (0) target = $region33
    $region32: #{tpu_custom_call.1} parent=1 // pred_region
      %s978 = ssub.s32 128, 128
      %979 = vsyncadd [#allocation4], %s978
      %s981 = sshll.u32 [#allocation3], 4
      %s982 = int_to_ptr.vmem [resolvable:$true] %s981
      %984 = dma.vmem_to_hbm [thread:$0]  %s982, 128, %s7, [#allocation4]
    $region33: #{tpu_custom_call.1} parent=1 // pred_fallthru
      _
    // Predicated region
    $region34: #{tpu_custom_call.1} parent=1 // pred_check
      _
    $region35: #{tpu_custom_call.1} parent=1 // pred_check_branch
      %986 = sbr.rel (0) target = $region37
    $region36: #{tpu_custom_call.1} parent=1 // pred_region
      %987 = dma.done [#allocation4], 128
    $region37: #{tpu_custom_call.1} parent=1 // pred_fallthru
      _
    %988 = vsyncpa [#allocation4], 1

</llo_original>
